<compile_context>
chip_gen: v7x
topology: tpu7x:2x2x1
jax: 0.10.0
libtpu: 0.0.40
codegen_flags: <defaults>
</compile_context>

<pallas_src>
import jax
import jax.numpy as jnp
from jax.experimental import pallas as pl
from jax.experimental.pallas import tpu as pltpu


def _class_attn_proj_kernel(ind_ref, w_ref, p_ref, neg_ref, pos_ref):
    # ind_ref: (K, TM)  bf16  im2col'd binary indicator, token index in lanes
    # w_ref:   (E, K)   bf16  conv weight pre-scaled by (pp - np), resident
    # p_ref:   (E, 4)   f32   [b_pos - mean(b_pos), b_neg - mean(b_neg), gamma, beta], resident
    # neg_ref/pos_ref: (E, TM) f32, channel-major (matches NCHW token order)
    t = jnp.dot(w_ref[...], ind_ref[...],
                preferred_element_type=jnp.float32)          # (E, TM) on the MXU
    tc = t - jnp.mean(t, axis=0, keepdims=True)              # shared token mean over E
    gamma = p_ref[:, 2:3]
    beta = p_ref[:, 3:4]

    def layernorm_centered(yc):                              # yc is already mean-free over E
        var = jnp.mean(yc * yc, axis=0, keepdims=True)
        inv = jax.lax.rsqrt(var + 1e-5)                      # PyTorch LayerNorm default eps
        return yc * inv * gamma + beta

    neg_ref[...] = layernorm_centered(p_ref[:, 1:2] - tc).astype(neg_ref.dtype)
    pos_ref[...] = layernorm_centered(p_ref[:, 0:1] + tc).astype(pos_ref.dtype)


def light_weight_class_attention_forward(mask, class_index, pp, np_,
                                         weight, bias, gamma, beta, patch_size):
    """mask: (B, H, W) int; class_index: int; pp/np_: float scalars.
    weight: (E, 1, ph, pw) conv weight; bias: (E,); gamma/beta: (E,) LayerNorm affine.
    Returns (proj_neg, proj_pos, proj_mask) matching the PyTorch module."""
    B, H, W = mask.shape
    ph, pw = (patch_size, patch_size) if isinstance(patch_size, int) else tuple(patch_size)
    # The module's proj_mask einops rearrange requires divisibility, so PatchEmbed's
    # zero-pad branch is unreachable inside LightWeightClassAttention.
    # TODO(synk): implement the right/bottom zero-pad branch if PatchEmbed is used standalone.
    assert H % ph == 0 and W % pw == 0, "mask spatial dims must be divisible by patch_size"
    Hp, Wp = H // ph, W // pw
    E = weight.shape[0]
    K = ph * pw
    HWp = Hp * Wp

    pp = jnp.float32(pp)
    np_ = jnp.float32(np_)

    # Binary indicator, im2col'd TRANSPOSED: (B, K, Hp*Wp) with tokens in the minor
    # (lane) dim.  ind_t[b, i*pw+j, r*Wp+c] = (mask[b, r*ph+i, c*pw+j] == class_index).
    ind = (mask == class_index)
    ind_t = (ind.reshape(B, Hp, ph, Wp, pw)
                .transpose(0, 2, 4, 1, 3)
                .reshape(B, K, HWp)
                .astype(jnp.bfloat16))                        # exact for {0,1}

    # Fold where() into the weights/biases:
    #   pos_pre = (pp-np) * (W @ ind) + bias + np*colsum(W)
    #   neg_pre = -(pp-np) * (W @ ind) + bias + pp*colsum(W)
    w2d = weight.reshape(E, K).astype(jnp.float32)            # (E, K), k = i*pw + j
    colsum = jnp.sum(w2d, axis=1)                             # (E,)
    w_scaled = ((pp - np_) * w2d).astype(jnp.bfloat16)        # bf16 MXU operand
    b_pos = bias.astype(jnp.float32) + np_ * colsum
    b_neg = bias.astype(jnp.float32) + pp * colsum
    # Center the biases over E here, so the kernel's LayerNorm only needs mean(t) once.
    params = jnp.stack([b_pos - jnp.mean(b_pos),
                        b_neg - jnp.mean(b_neg),
                        gamma.astype(jnp.float32),
                        beta.astype(jnp.float32)], axis=1)    # (E, 4), resident

    # Per-batch token tiling.  TM up to 8192 (multiple of 128) amortizes the ~0.35us
    # per-step pipeline overhead while keeping the double-buffered footprint (~9 MiB)
    # under the v5e 16 MiB default scoped VMEM.
    TM_CAP = 8192
    if HWp <= TM_CAP:
        TM, n_tiles, HWp_pad = HWp, 1, HWp                    # full-dim block (always legal)
    else:
        TM = TM_CAP
        n_tiles = pl.cdiv(HWp, TM)
        HWp_pad = n_tiles * TM
        if HWp_pad != HWp:
            ind_t = jnp.pad(ind_t, ((0, 0), (0, 0), (0, HWp_pad - HWp)))

    neg_t, pos_t = pl.pallas_call(
        _class_attn_proj_kernel,
        out_shape=(jax.ShapeDtypeStruct((B, E, HWp_pad), jnp.float32),
                   jax.ShapeDtypeStruct((B, E, HWp_pad), jnp.float32)),
        grid=(B, n_tiles),
        in_specs=[
            pl.BlockSpec((None, K, TM), lambda b, i: (b, 0, i)),   # indicator patches
            pl.BlockSpec((E, K), lambda b, i: (0, 0)),             # scaled weight (resident)
            pl.BlockSpec((E, 4), lambda b, i: (0, 0)),             # packed LN params (resident)
        ],
        out_specs=[
            pl.BlockSpec((None, E, TM), lambda b, i: (b, 0, i)),   # proj_neg, channel-major
            pl.BlockSpec((None, E, TM), lambda b, i: (b, 0, i)),   # proj_pos, channel-major
        ],
        compiler_params=pltpu.CompilerParams(
            dimension_semantics=("parallel", "parallel")),
    )(ind_t, w_scaled, params)

    if HWp_pad != HWp:
        neg_t = neg_t[:, :, :HWp]
        pos_t = pos_t[:, :, :HWp]
    proj_neg = neg_t.reshape(B, E, Hp, Wp)                    # already NCHW -> free reshape
    proj_pos = pos_t.reshape(B, E, Hp, Wp)

    # proj_mask: pure data-movement rearrange 'b (h ph) (w pw) -> b (ph pw) h w'.
    proj_mask = jnp.transpose(mask.reshape(B, Hp, ph, Wp, pw),
                              (0, 2, 4, 1, 3)).reshape(B, ph * pw, Hp, Wp)

    return proj_neg, proj_pos, proj_mask


def _reference(mask, class_index, pp, np_, weight, bias, gamma, beta, p):
    """Pure-JAX reference: where -> strided conv -> LayerNorm, plus the rearrange."""
    B, H, W = mask.shape
    is_cls = (mask == class_index)
    positive = jnp.where(is_cls, pp, np_).astype(jnp.float32)[:, None]
    negative = jnp.where(is_cls, np_, pp).astype(jnp.float32)[:, None]

    def patch_embed(x):
        y = jax.lax.conv_general_dilated(
            x, weight, window_strides=(p, p), padding="VALID",
            dimension_numbers=("NCHW", "OIHW", "NCHW"),
            precision=jax.lax.Precision.HIGHEST) + bias.reshape(1, -1, 1, 1)
        Bb, E, Hp, Wp = y.shape
        t = y.reshape(Bb, E, Hp * Wp).transpose(0, 2, 1)
        mu = t.mean(-1, keepdims=True)
        var = ((t - mu) ** 2).mean(-1, keepdims=True)
        t = (t - mu) / jnp.sqrt(var + 1e-5) * gamma + beta
        return t.transpose(0, 2, 1).reshape(Bb, E, Hp, Wp)

    Hp, Wp = H // p, W // p
    proj_mask = jnp.transpose(mask.reshape(B, Hp, p, Wp, p),
                              (0, 2, 4, 1, 3)).reshape(B, p * p, Hp, Wp)
    return patch_embed(negative), patch_embed(positive), proj_mask


if __name__ == "__main__":
    key = jax.random.PRNGKey(0)
    k_m, k_w, k_b, k_g, k_be = jax.random.split(key, 5)

    B, H, W = 2, 16, 16
    patch_size = 4
    embed_dim = 32
    num_classes = 6
    class_index = 2
    pp, np_ = 1.5, -0.5

    mask = jax.random.randint(k_m, (B, H, W), 0, num_classes, dtype=jnp.int32)
    # Deterministic synthetic parameters (no checkpoint load).
    weight = jax.random.normal(k_w, (embed_dim, 1, patch_size, patch_size),
                               dtype=jnp.float32) * 0.02
    bias = jax.random.normal(k_b, (embed_dim,), dtype=jnp.float32) * 0.02
    gamma = 1.0 + 0.1 * jax.random.normal(k_g, (embed_dim,), dtype=jnp.float32)
    beta = 0.1 * jax.random.normal(k_be, (embed_dim,), dtype=jnp.float32)

    proj_neg, proj_pos, proj_mask = light_weight_class_attention_forward(
        mask, class_index, pp, np_, weight, bias, gamma, beta,
        (patch_size, patch_size))
    jax.block_until_ready((proj_neg, proj_pos, proj_mask))

    ref_neg, ref_pos, ref_mask = _reference(
        mask, class_index, pp, np_, weight, bias, gamma, beta, patch_size)

    Hp, Wp = H // patch_size, W // patch_size
    assert proj_neg.shape == (B, embed_dim, Hp, Wp)
    assert proj_pos.shape == (B, embed_dim, Hp, Wp)
    assert proj_mask.shape == (B, patch_size * patch_size, Hp, Wp)
    # bf16-fed MXU (weights rounded to bf16) -> compare against the strict-f32 reference
    # with a correspondingly relaxed tolerance; post-LayerNorm values are O(1).
    assert jnp.allclose(proj_neg, ref_neg, atol=3e-2, rtol=3e-2)
    assert jnp.allclose(proj_pos, ref_pos, atol=3e-2, rtol=3e-2)
    assert jnp.array_equal(proj_mask, ref_mask)

    print("KERNEL_OK")
</pallas_src>

<mosaic_0001>
module attributes {stable_mosaic.version = 11 : i64} {
  func.func @_class_attn_proj_kernel(%arg0: i32, %arg1: i32, %arg2: memref<1x16x16xbf16, #tpu.memory_space<vmem>>, %arg3: memref<32x16xbf16, #tpu.memory_space<vmem>>, %arg4: memref<32x4xf32, #tpu.memory_space<vmem>>, %arg5: memref<1x32x16xf32, #tpu.memory_space<vmem>>, %arg6: memref<1x32x16xf32, #tpu.memory_space<vmem>>) attributes {dimension_semantics = [#tpu.dimension_semantics<parallel>, #tpu.dimension_semantics<parallel>], iteration_bounds = array<i64: 2, 1>, scalar_prefetch = 0 : i64, scratch_operands = 0 : i64, tpu.core_type = #tpu.core_type<tc>, window_params = [{transform_indices = @transform_0, window_bounds = array<i64: 1, 16, 16>}, {pipeline_mode = #tpu.pipeline_mode<synchronous>, transform_indices = @transform_1, window_bounds = array<i64: 32, 16>}, {pipeline_mode = #tpu.pipeline_mode<synchronous>, transform_indices = @transform_2, window_bounds = array<i64: 32, 4>}, {transform_indices = @transform_3, window_bounds = array<i64: 1, 32, 16>}, {transform_indices = @transform_4, window_bounds = array<i64: 1, 32, 16>}]} {
    %c0 = arith.constant 0 : index
    %c0_0 = arith.constant 0 : index
    %0 = vector.load %arg3[%c0, %c0_0] : memref<32x16xbf16, #tpu.memory_space<vmem>>, vector<32x16xbf16>
    %c0_1 = arith.constant 0 : index
    %c0_2 = arith.constant 0 : index
    %c0_3 = arith.constant 0 : index
    %1 = vector.load %arg2[%c0_1, %c0_2, %c0_3] : memref<1x16x16xbf16, #tpu.memory_space<vmem>>, vector<1x16x16xbf16>
    %2 = vector.shape_cast %1 : vector<1x16x16xbf16> to vector<16x16xbf16>
    %cst = arith.constant dense<0.000000e+00> : vector<32x16xf32>
    %3 = tpu.matmul %0, %2, %cst {dimension_numbers = #tpu.dot_dimension_numbers<[1], [0], [0], [1], [0, 0, 1, 1], [], []>} : vector<32x16xbf16>, vector<16x16xbf16>, vector<32x16xf32> -> vector<32x16xf32>
    %cst_4 = arith.constant dense<0.000000e+00> : vector<16xf32>
    %4 = vector.multi_reduction <add>, %3, %cst_4 [0] : vector<32x16xf32> to vector<16xf32>
    %5 = vector.shape_cast %4 : vector<16xf32> to vector<1x16xf32>
    %cst_5 = arith.constant 3.200000e+01 : f32
    %6 = vector.broadcast %cst_5 : f32 to vector<1x16xf32>
    %7 = arith.divf %5, %6 : vector<1x16xf32>
    %8 = vector.broadcast %7 : vector<1x16xf32> to vector<32x16xf32>
    %9 = arith.subf %3, %8 : vector<32x16xf32>
    %c0_6 = arith.constant 0 : index
    %c2 = arith.constant 2 : index
    %10 = vector.load %arg4[%c0_6, %c2] : memref<32x4xf32, #tpu.memory_space<vmem>>, vector<32x1xf32>
    %c0_7 = arith.constant 0 : index
    %c3 = arith.constant 3 : index
    %11 = vector.load %arg4[%c0_7, %c3] : memref<32x4xf32, #tpu.memory_space<vmem>>, vector<32x1xf32>
    %c0_8 = arith.constant 0 : index
    %c1 = arith.constant 1 : index
    %12 = vector.load %arg4[%c0_8, %c1] : memref<32x4xf32, #tpu.memory_space<vmem>>, vector<32x1xf32>
    %13 = vector.broadcast %12 : vector<32x1xf32> to vector<32x16xf32>
    %14 = arith.subf %13, %9 : vector<32x16xf32>
    %15 = arith.mulf %14, %14 : vector<32x16xf32>
    %cst_9 = arith.constant dense<0.000000e+00> : vector<16xf32>
    %16 = vector.multi_reduction <add>, %15, %cst_9 [0] : vector<32x16xf32> to vector<16xf32>
    %17 = vector.shape_cast %16 : vector<16xf32> to vector<1x16xf32>
    %cst_10 = arith.constant 3.200000e+01 : f32
    %18 = vector.broadcast %cst_10 : f32 to vector<1x16xf32>
    %19 = arith.divf %17, %18 : vector<1x16xf32>
    %cst_11 = arith.constant 9.99999974E-6 : f32
    %20 = vector.broadcast %cst_11 : f32 to vector<1x16xf32>
    %21 = arith.addf %19, %20 : vector<1x16xf32>
    %22 = math.rsqrt %21 : vector<1x16xf32>
    %23 = vector.broadcast %22 : vector<1x16xf32> to vector<32x16xf32>
    %24 = arith.mulf %14, %23 : vector<32x16xf32>
    %25 = vector.broadcast %10 : vector<32x1xf32> to vector<32x16xf32>
    %26 = arith.mulf %24, %25 : vector<32x16xf32>
    %27 = vector.broadcast %11 : vector<32x1xf32> to vector<32x16xf32>
    %28 = arith.addf %26, %27 : vector<32x16xf32>
    %c0_12 = arith.constant 0 : index
    %c0_13 = arith.constant 0 : index
    %c0_14 = arith.constant 0 : index
    %29 = vector.load %arg5[%c0_12, %c0_13, %c0_14] : memref<1x32x16xf32, #tpu.memory_space<vmem>>, vector<1x32x16xf32>
    %30 = vector.shape_cast %29 : vector<1x32x16xf32> to vector<32x16xf32>
    %31 = vector.shape_cast %28 : vector<32x16xf32> to vector<1x32x16xf32>
    tpu.vector_store %arg5[%c0_12, %c0_13, %c0_14], %31 {strides = array<i32>} : memref<1x32x16xf32, #tpu.memory_space<vmem>>, vector<1x32x16xf32>,
    %c0_15 = arith.constant 0 : index
    %c0_16 = arith.constant 0 : index
    %32 = vector.load %arg4[%c0_15, %c0_16] : memref<32x4xf32, #tpu.memory_space<vmem>>, vector<32x1xf32>
    %33 = vector.broadcast %32 : vector<32x1xf32> to vector<32x16xf32>
    %34 = arith.addf %33, %9 : vector<32x16xf32>
    %35 = arith.mulf %34, %34 : vector<32x16xf32>
    %cst_17 = arith.constant dense<0.000000e+00> : vector<16xf32>
    %36 = vector.multi_reduction <add>, %35, %cst_17 [0] : vector<32x16xf32> to vector<16xf32>
    %37 = vector.shape_cast %36 : vector<16xf32> to vector<1x16xf32>
    %cst_18 = arith.constant 3.200000e+01 : f32
    %38 = vector.broadcast %cst_18 : f32 to vector<1x16xf32>
    %39 = arith.divf %37, %38 : vector<1x16xf32>
    %cst_19 = arith.constant 9.99999974E-6 : f32
    %40 = vector.broadcast %cst_19 : f32 to vector<1x16xf32>
    %41 = arith.addf %39, %40 : vector<1x16xf32>
    %42 = math.rsqrt %41 : vector<1x16xf32>
    %43 = vector.broadcast %42 : vector<1x16xf32> to vector<32x16xf32>
    %44 = arith.mulf %34, %43 : vector<32x16xf32>
    %45 = vector.broadcast %10 : vector<32x1xf32> to vector<32x16xf32>
    %46 = arith.mulf %44, %45 : vector<32x16xf32>
    %47 = vector.broadcast %11 : vector<32x1xf32> to vector<32x16xf32>
    %48 = arith.addf %46, %47 : vector<32x16xf32>
    %c0_20 = arith.constant 0 : index
    %c0_21 = arith.constant 0 : index
    %c0_22 = arith.constant 0 : index
    %49 = vector.load %arg6[%c0_20, %c0_21, %c0_22] : memref<1x32x16xf32, #tpu.memory_space<vmem>>, vector<1x32x16xf32>
    %50 = vector.shape_cast %49 : vector<1x32x16xf32> to vector<32x16xf32>
    %51 = vector.shape_cast %48 : vector<32x16xf32> to vector<1x32x16xf32>
    tpu.vector_store %arg6[%c0_20, %c0_21, %c0_22], %51 {strides = array<i32>} : memref<1x32x16xf32, #tpu.memory_space<vmem>>, vector<1x32x16xf32>,
    return
  }
  func.func @transform_0(%arg0: i32, %arg1: i32) -> (i32, i32, i32) {
    %c0_i32 = arith.constant 0 : i32
    %c0_i32_0 = arith.constant 0 : i32
    return %arg0, %c0_i32, %arg1 : i32, i32, i32
  }
  func.func @transform_1(%arg0: i32, %arg1: i32) -> (i32, i32) {
    %c0_i32 = arith.constant 0 : i32
    %c0_i32_0 = arith.constant 0 : i32
    %c0_i32_1 = arith.constant 0 : i32
    return %c0_i32, %c0_i32_0 : i32, i32
  }
  func.func @transform_2(%arg0: i32, %arg1: i32) -> (i32, i32) {
    %c0_i32 = arith.constant 0 : i32
    %c0_i32_0 = arith.constant 0 : i32
    %c0_i32_1 = arith.constant 0 : i32
    return %c0_i32, %c0_i32_0 : i32, i32
  }
  func.func @transform_3(%arg0: i32, %arg1: i32) -> (i32, i32, i32) {
    %c0_i32 = arith.constant 0 : i32
    %c0_i32_0 = arith.constant 0 : i32
    return %arg0, %c0_i32, %arg1 : i32, i32, i32
  }
  func.func @transform_4(%arg0: i32, %arg1: i32) -> (i32, i32, i32) {
    %c0_i32 = arith.constant 0 : i32
    %c0_i32_0 = arith.constant 0 : i32
    return %arg0, %c0_i32, %arg1 : i32, i32, i32
  }
}

</mosaic_0001>

<llo_original>
// kernel: tpu_custom_call.1
$region0: #{tpu_custom_call.1}
  #allocation0 [shape = 'u32[]', space=smem, size = 0x4, offset = 0x4, fixed_abs, tag = 'smem constant byte address 0x4 - core index']
  #allocation1 [shape = 'u32[144,128]{1,0:T(1,128)}', space=vmem, size = 0x12000, scoped, tag = 'internal scratch']
  %s0 = inlined_call_operand.vmem [shape: bf16[2,16,16], index: 0, kind: input, shape index: {}]
  %s1 = inlined_call_operand.vmem [shape: bf16[32,16], index: 1, kind: input, shape index: {}]
  %s2 = inlined_call_operand.vmem [shape: f32[32,4], index: 2, kind: input, shape index: {}]
  %s3 = inlined_call_operand.vmem [shape: f32[2,32,16], index: 3, kind: output, shape index: {0}]
  %s4 = inlined_call_operand.vmem [shape: f32[2,32,16], index: 4, kind: output, shape index: {1}]
  %5 = xla_tuple %s3, %s4
  %s6 = sld [smem:[#allocation0]]
  $region53: #{tpu_custom_call.1} parent=0
    _
  %s8 = ssub.s32 1, %s6
  %s9 = scalar_select 0, %s8, %s6
  loop: start=0, step=1, limit=4
  $region2: #{tpu_custom_call.1} parent=0 // loop_pre_header
    _
  $region3: #{tpu_custom_call.1} parent=0 // loop_header
    %s11 = sphi 0, %s15
    %p12 = scmp.ge.s32.totalorder %s11, 4
    %s18 = sphi 0, %s30
    %s19 = sphi 0, %s26
    %s20 = sphi 0, %s18
    %s21 = sphi 0, %s19
    %s22 = sphi 0, %s20
    %s23 = sphi 0, %s21
    %s35 = sphi 0, %s37
    %s38 = sphi 0, %s35
    %s39 = sphi 0, %s38
    %s55 = sphi 0, %s39
    %s59 = sphi 0, %s59
    %s61 = sphi 0, %s59
    %s62 = sphi 0, %s61
    %s76 = sphi 0, %s62
    %s80 = sphi 0, %s80
    %s82 = sphi 0, %s80
    %s83 = sphi 0, %s82
    %s97 = sphi 0, %s83
    %s105 = sphi 0, %s107
    %s108 = sphi 0, %s105
    %s109 = sphi 0, %s108
    %s125 = sphi 0, %s109
    %s133 = sphi 0, %s135
    %s136 = sphi 0, %s133
    %s137 = sphi 0, %s136
    %s153 = sphi 0, %s137
  $region4: #{tpu_custom_call.1} parent=0 // loop_header_branch
    %14 = sbr.rel (%p12) target = $region8
  $region5: #{tpu_custom_call.1} parent=0 // loop_body
    %s16 = ssub.s32 %s11, 1
    %s17 = ssub.s32 %s11, 2
    %s24 = sadd.s32 1, %s19
    %p25 = scmp.ge.s32.totalorder %s24, 1
    %s26 = scalar_select %p25, 0, %s24
    %s27 = sadd.s32 1, %s18
    %s28 = scalar_select %p25, %s27, %s18
    %p29 = scmp.ge.s32.totalorder %s28, 2
    %s30 = scalar_select %p29, 0, %s28
    %s31 = ssub.s32 %s18, %s30
    %s32 = ssub.s32 %s19, %s26
    %s33 = sor.u32 %s31, %s32
    %p34 = scmp.eq.s32.totalorder %s33, 0
    %s36 = sadd.s32 %s35, 1
    %s37 = scalar_select %p34, %s35, %s36
    %p40 = pneg %p34
    %p41 = scmp.eq.s32.totalorder %s11, 1
    %p42 = por %p40, %p41
    %p43 = scmp.ne.s32.totalorder %s35, %s38
    %p44 = scmp.eq.s32.totalorder %s11, 0
    %p45 = por %p43, %p44
    %p46 = scmp.ne.s32.totalorder %s35, %s38
    %p47 = scmp.eq.s32.totalorder %s16, 1
    %p48 = por %p46, %p47
    %p49 = scmp.ne.s32.totalorder %s38, %s39
    %p50 = scmp.eq.s32.totalorder %s16, 0
    %p51 = por %p49, %p50
    %p52 = scmp.ne.s32.totalorder %s38, %s39
    %p53 = scmp.eq.s32.totalorder %s17, 1
    %p54 = por %p52, %p53
    %p56 = scmp.ne.s32.totalorder %s39, %s55
    %p57 = scmp.eq.s32.totalorder %s17, 0
    %p58 = por %p56, %p57
    %s60 = sadd.s32 %s59, 1
    %p63 = scmp.eq.s32.totalorder %s11, 1
    %p64 = scmp.ne.s32.totalorder %s59, %s61
    %p65 = scmp.eq.s32.totalorder %s11, 0
    %p66 = por %p64, %p65
    %p67 = scmp.ne.s32.totalorder %s59, %s61
    %p68 = scmp.eq.s32.totalorder %s16, 1
    %p69 = por %p67, %p68
    %p70 = scmp.ne.s32.totalorder %s61, %s62
    %p71 = scmp.eq.s32.totalorder %s16, 0
    %p72 = por %p70, %p71
    %p73 = scmp.ne.s32.totalorder %s61, %s62
    %p74 = scmp.eq.s32.totalorder %s17, 1
    %p75 = por %p73, %p74
    %p77 = scmp.ne.s32.totalorder %s62, %s76
    %p78 = scmp.eq.s32.totalorder %s17, 0
    %p79 = por %p77, %p78
    %s81 = sadd.s32 %s80, 1
    %p84 = scmp.eq.s32.totalorder %s11, 1
    %p85 = scmp.ne.s32.totalorder %s80, %s82
    %p86 = scmp.eq.s32.totalorder %s11, 0
    %p87 = por %p85, %p86
    %p88 = scmp.ne.s32.totalorder %s80, %s82
    %p89 = scmp.eq.s32.totalorder %s16, 1
    %p90 = por %p88, %p89
    %p91 = scmp.ne.s32.totalorder %s82, %s83
    %p92 = scmp.eq.s32.totalorder %s16, 0
    %p93 = por %p91, %p92
    %p94 = scmp.ne.s32.totalorder %s82, %s83
    %p95 = scmp.eq.s32.totalorder %s17, 1
    %p96 = por %p94, %p95
    %p98 = scmp.ne.s32.totalorder %s83, %s97
    %p99 = scmp.eq.s32.totalorder %s17, 0
    %p100 = por %p98, %p99
    %s101 = ssub.s32 %s18, %s30
    %s102 = ssub.s32 %s19, %s26
    %s103 = sor.u32 %s101, %s102
    %p104 = scmp.eq.s32.totalorder %s103, 0
    %s106 = sadd.s32 %s105, 1
    %s107 = scalar_select %p104, %s105, %s106
    %p110 = pneg %p104
    %p111 = scmp.eq.s32.totalorder %s11, 1
    %p112 = por %p110, %p111
    %p113 = scmp.ne.s32.totalorder %s105, %s108
    %p114 = scmp.eq.s32.totalorder %s11, 0
    %p115 = por %p113, %p114
    %p116 = scmp.ne.s32.totalorder %s105, %s108
    %p117 = scmp.eq.s32.totalorder %s16, 1
    %p118 = por %p116, %p117
    %p119 = scmp.ne.s32.totalorder %s108, %s109
    %p120 = scmp.eq.s32.totalorder %s16, 0
    %p121 = por %p119, %p120
    %p122 = scmp.ne.s32.totalorder %s108, %s109
    %p123 = scmp.eq.s32.totalorder %s17, 1
    %p124 = por %p122, %p123
    %p126 = scmp.ne.s32.totalorder %s109, %s125
    %p127 = scmp.eq.s32.totalorder %s17, 0
    %p128 = por %p126, %p127
    %s129 = ssub.s32 %s18, %s30
    %s130 = ssub.s32 %s19, %s26
    %s131 = sor.u32 %s129, %s130
    %p132 = scmp.eq.s32.totalorder %s131, 0
    %s134 = sadd.s32 %s133, 1
    %s135 = scalar_select %p132, %s133, %s134
    %p138 = pneg %p132
    %p139 = scmp.eq.s32.totalorder %s11, 1
    %p140 = por %p138, %p139
    %p141 = scmp.ne.s32.totalorder %s133, %s136
    %p142 = scmp.eq.s32.totalorder %s11, 0
    %p143 = por %p141, %p142
    %p144 = scmp.ne.s32.totalorder %s133, %s136
    %p145 = scmp.eq.s32.totalorder %s16, 1
    %p146 = por %p144, %p145
    %p147 = scmp.ne.s32.totalorder %s136, %s137
    %p148 = scmp.eq.s32.totalorder %s16, 0
    %p149 = por %p147, %p148
    %p150 = scmp.ne.s32.totalorder %s136, %s137
    %p151 = scmp.eq.s32.totalorder %s17, 1
    %p152 = por %p150, %p151
    %p154 = scmp.ne.s32.totalorder %s137, %s153
    %p155 = scmp.eq.s32.totalorder %s17, 0
    %p156 = por %p154, %p155
    %p157 = scmp.le.s32.totalorder 1, %s11
    %p158 = scmp.lt.s32.totalorder %s11, 3
    %p159 = pnand %p157, %p158
    %p160 = pneg %p159
    // Predicated region
    $region9: #{tpu_custom_call.1} parent=5 // pred_check
      _
    $region10: #{tpu_custom_call.1} parent=5 // pred_check_branch
      %162 = sbr.rel (%p159) target = $region12
    $region11: #{tpu_custom_call.1} parent=5 // pred_region
      %s163 = ssub.s32 %s11, 1
      // Predicated region
      $region13: #{tpu_custom_call.1} parent=11 // pred_check
        %p164 = pneg %p72
      $region14: #{tpu_custom_call.1} parent=11 // pred_check_branch
        %166 = sbr.rel (%p164) target = $region16
      $region15: #{tpu_custom_call.1} parent=11 // pred_region
        _
      $region16: #{tpu_custom_call.1} parent=11 // pred_fallthru
        _
      // Predicated region
      $region17: #{tpu_custom_call.1} parent=11 // pred_check
        %p167 = pneg %p93
      $region18: #{tpu_custom_call.1} parent=11 // pred_check_branch
        %169 = sbr.rel (%p167) target = $region20
      $region19: #{tpu_custom_call.1} parent=11 // pred_region
        _
      $region20: #{tpu_custom_call.1} parent=11 // pred_fallthru
        _
    $region12: #{tpu_custom_call.1} parent=5 // pred_fallthru
      _
    %p170 = scmp.lt.s32.totalorder %s11, 2
    // Predicated region
    $region21: #{tpu_custom_call.1} parent=5 // pred_check
      %p171 = pneg %p170
    $region22: #{tpu_custom_call.1} parent=5 // pred_check_branch
      %173 = sbr.rel (%p171) target = $region24
    $region23: #{tpu_custom_call.1} parent=5 // pred_region
      // Predicated region
      $region25: #{tpu_custom_call.1} parent=23 // pred_check
        %p174 = pneg %p45
      $region26: #{tpu_custom_call.1} parent=23 // pred_check_branch
        %176 = sbr.rel (%p174) target = $region28
      $region27: #{tpu_custom_call.1} parent=23 // pred_region
        %p177 = scmp.lt.s32.totalorder %s18, 1
        %s178 = scalar_select %p177, %s18, 1
        %p179 = scmp.lt.s32.totalorder %s19, 0
        %s180 = scalar_select %p179, %s19, 0
        %s181 = smul.addr %s178, 2
        %s182 = sadd.s32 %s180, %s181
        %s183 = smul.addr %s182, 4
        %s184 = scalar_lea.vmem %s0, %s183
      $region28: #{tpu_custom_call.1} parent=23 // pred_fallthru
        _
    $region24: #{tpu_custom_call.1} parent=5 // pred_fallthru
      _
    %p185 = scmp.le.s32.totalorder 1, %s11
    %p186 = scmp.lt.s32.totalorder %s11, 3
    %p187 = pnand %p185, %p186
    %p188 = pneg %p187
    // Predicated region
    $region29: #{tpu_custom_call.1} parent=5 // pred_check
      _
    $region30: #{tpu_custom_call.1} parent=5 // pred_check_branch
      %190 = sbr.rel (%p187) target = $region32
    $region31: #{tpu_custom_call.1} parent=5 // pred_region
      %s191 = ssub.s32 %s11, 1
      %p192 = scmp.lt.s32.totalorder %s20, 1
      %s193 = scalar_select %p192, %s20, 1
      %p194 = scmp.lt.s32.totalorder %s21, 0
      %s195 = scalar_select %p194, %s21, 0
      %s196 = smul.addr %s193, 2
      %s197 = sadd.s32 %s195, %s196
      %s198 = smul.addr %s197, 4
      %s199 = scalar_lea.vmem %s0, %s198
      %p200 = pneg %p51
      %p201 = pneg %p48
      %p202 = pneg %p72
      %p203 = pneg %p69
      %p204 = pneg %p93
      %p205 = pneg %p90
      %p206 = pneg %p121
      %p207 = pneg %p118
      %p208 = scmp.lt.s32.totalorder %s20, 1
      %s209 = scalar_select %p208, %s20, 1
      %p210 = scmp.lt.s32.totalorder %s21, 0
      %s211 = scalar_select %p210, %s21, 0
      %s212 = smul.addr %s209, 4
      %s213 = sadd.s32 %s211, %s212
      %s214 = smul.addr %s213, 8
      %s215 = scalar_lea.vmem %s3, %s214
      %p216 = pneg %p149
      %p217 = pneg %p146
      %p218 = scmp.lt.s32.totalorder %s20, 1
      %s219 = scalar_select %p218, %s20, 1
      %p220 = scmp.lt.s32.totalorder %s21, 0
      %s221 = scalar_select %p220, %s21, 0
      %s222 = smul.addr %s219, 4
      %s223 = sadd.s32 %s221, %s222
      %s224 = smul.addr %s223, 8
      %s225 = scalar_lea.vmem %s4, %s224
      %p226 = scmp.lt.s32.totalorder %s20, 1
      %s227 = scalar_select %p226, %s20, 1
      %p228 = scmp.lt.s32.totalorder %s21, 0
      %s229 = scalar_select %p228, %s21, 0
      %s230 = smul.addr %s227, 2
      %s231 = sadd.s32 %s229, %s230
      %s232 = smul.addr %s231, 4
      %s233 = scalar_lea.vmem %s0, %s232
      %p234 = scmp.lt.s32.totalorder %s20, 1
      %s235 = scalar_select %p234, %s20, 1
      %p236 = scmp.lt.s32.totalorder %s21, 0
      %s237 = scalar_select %p236, %s21, 0
      %s238 = smul.addr %s235, 4
      %s239 = sadd.s32 %s237, %s238
      %s240 = smul.addr %s239, 8
      %s241 = scalar_lea.vmem %s3, %s240
      %p242 = scmp.lt.s32.totalorder %s20, 1
      %s243 = scalar_select %p242, %s20, 1
      %p244 = scmp.lt.s32.totalorder %s21, 0
      %s245 = scalar_select %p244, %s21, 0
      %s246 = smul.addr %s243, 4
      %s247 = sadd.s32 %s245, %s246
      %s248 = smul.addr %s247, 8
      %s249 = scalar_lea.vmem %s4, %s248
      %v251 = vld [vmem:[%s1] sm:$0xf]
      %v252 = vld [vmem:[%s1 + $0x4] sm:$0xf]
      %v253 = vld [vmem:[%s1 + $0x8] sm:$0xf]
      %v254 = vld [vmem:[%s1 + $0xc] sm:$0xf]
      %v255 = vld [vmem:[%s233] sm:$0xf]
      %v256 = vld [vmem:[%s233 + $0x4] sm:$0xf]
      %v261 = vunpack.c.l.b16 %v251
      %v262 = vunpack.c.l.b16 %v252
      %v263 = vunpack.c.l.b16 %v253
      %v264 = vunpack.c.l.b16 %v254
      %v265 = vpack.c.b16 %v262, %v261
      %v266 = vpack.c.b16 %v264, %v263
      %v269 = vunpack.c.l.b16 %v255
      %v270 = vunpack.c.l.b16 %v256
      %v271 = vpack.c.b16 %v270, %v269
      %vm273 = vcmask 130048
      %v275 = vsel %vm273, %v265, 0
      %v278 = vsel %vm273, %v266, 0
      %280 = vmatprep.subr.bf16.mxu0 0
      %281 = vmatpush1.bf16.msra.mxu0 %v271
      %282 = vmatprep.subr.bf16.mxu0 0
      %283 = vmatpush1.bf16.msra.mxu0 0
      %284 = vmatprep.subr.bf16.mxu0 0
      %285 = vmatpush1.bf16.msra.mxu0 0
      %286 = vmatprep.subr.bf16.mxu0 0
      %287 = vmatpush1.bf16.msra.mxu0 0
      %288 = vmatprep.subr.bf16.mxu0 0
      %289 = vmatpush1.bf16.msra.mxu0 0
      %290 = vmatprep.subr.bf16.mxu0 0
      %291 = vmatpush1.bf16.msra.mxu0 0
      %292 = vmatprep.subr.bf16.mxu0 0
      %293 = vmatpush1.bf16.msra.mxu0 0
      %294 = vmatprep.subr.bf16.mxu0 0
      %295 = vmatpush1.bf16.msra.mxu0 0
      %296 = vmatprep.subr.bf16.mxu0 0
      %297 = vmatpush1.bf16.msra.mxu0 0
      %298 = vmatprep.subr.bf16.mxu0 0
      %299 = vmatpush1.bf16.msra.mxu0 0
      %300 = vmatprep.subr.bf16.mxu0 0
      %301 = vmatpush1.bf16.msra.mxu0 0
      %302 = vmatprep.subr.bf16.mxu0 0
      %303 = vmatpush1.bf16.msra.mxu0 0
      %304 = vmatprep.subr.bf16.mxu0 0
      %305 = vmatpush1.bf16.msra.mxu0 0
      %306 = vmatprep.subr.bf16.mxu0 0
      %307 = vmatpush1.bf16.msra.mxu0 0
      %308 = vmatprep.subr.bf16.mxu0 0
      %309 = vmatpush1.bf16.msra.mxu0 0
      %310 = vmatprep.subr.bf16.mxu0 0
      %311 = vmatpush1.bf16.msra.mxu0 0
      %312 = vmatprep.mubr.bf16.mxu0 0
      %313 = vmatmul.mubr.bf16.gmra.mrb[0].mxu0 %v275
      %v314 = vpop.f32.mrb[0].mxu0
      %v315 = vadd.f32 0.0, %v314
      %v316 = vpop.f32.mrb[0].mxu0
      %v317 = vpop.f32.mrb[0].mxu0
      %v318 = vadd.f32 0.0, %v317
      %v319 = vpop.f32.mrb[0].mxu0
      %320 = vmatprep.mubr.bf16.mxu0 0
      %321 = vmatmul.mubr.bf16.gmra.mrb[0].mxu0 %v278
      %v322 = vpop.f32.mrb[0].mxu0
      %v323 = vadd.f32 0.0, %v322
      %v324 = vpop.f32.mrb[0].mxu0
      %v325 = vpop.f32.mrb[0].mxu0
      %v326 = vadd.f32 0.0, %v325
      %v327 = vpop.f32.mrb[0].mxu0
      %328 = vdwg.mxu0
      %v329 = vsel %vm273, %v315, 0.0
      %v330 = vsel %vm273, %v318, 0.0
      %v331 = vadd.f32 %v329, %v330
      %v332 = vsel %vm273, %v323, 0.0
      %v333 = vadd.f32 %v331, %v332
      %v334 = vsel %vm273, %v326, 0.0
      %v335 = vadd.f32 %v333, %v334
      %v336 = vrot.slane %v335, 4
      %v337 = vadd.f32 %v335, %v336
      %v338 = vrot.slane %v337, 2
      %v339 = vadd.f32 %v337, %v338
      %v340 = vrot.slane %v339, 1
      %v341 = vadd.f32 %v339, %v340
      %v342 = vrcp.pop 32.0
      %v343 = vmul.f32 %v341, %v342
      %v344 = vsub.f32 %v315, %v343
      %v345 = vsub.f32 %v318, %v343
      %v346 = vsub.f32 %v323, %v343
      %v347 = vsub.f32 %v326, %v343
      %v348 = vld [vmem:[%s2] sm:$0xff]
      %v349 = vld [vmem:[%s2 + $0x8] sm:$0xff]
      %v350 = vld [vmem:[%s2 + $0x10] sm:$0xff]
      %v351 = vld [vmem:[%s2 + $0x18] sm:$0xff]
      %353 = vset.pattern.permute.xlu0 1
      %354 = vperm.xlu0 %353, %v348
      %v355 = vpop.permute.xlu0 %354
      %358 = vset.pattern.permute.xlu0 1
      %359 = vperm.xlu0 %358, %v349
      %v360 = vpop.permute.xlu0 %359
      %363 = vset.pattern.permute.xlu0 1
      %364 = vperm.xlu0 %363, %v350
      %v365 = vpop.permute.xlu0 %364
      %368 = vset.pattern.permute.xlu0 1
      %369 = vperm.xlu0 %368, %v351
      %v370 = vpop.permute.xlu0 %369
      %v372 = vsub.f32 %v355, %v344
      %v373 = vsub.f32 %v360, %v345
      %v374 = vsub.f32 %v365, %v346
      %v375 = vsub.f32 %v370, %v347
      %v376 = vmul.f32 %v372, %v372
      %v377 = vmul.f32 %v373, %v373
      %v378 = vmul.f32 %v374, %v374
      %v379 = vmul.f32 %v375, %v375
      %v380 = vsel %vm273, %v376, 0.0
      %v381 = vsel %vm273, %v377, 0.0
      %v382 = vadd.f32 %v380, %v381
      %v383 = vsel %vm273, %v378, 0.0
      %v384 = vadd.f32 %v382, %v383
      %v385 = vsel %vm273, %v379, 0.0
      %v386 = vadd.f32 %v384, %v385
      %v387 = vrot.slane %v386, 4
      %v388 = vadd.f32 %v386, %v387
      %v389 = vrot.slane %v388, 2
      %v390 = vadd.f32 %v388, %v389
      %v391 = vrot.slane %v390, 1
      %v392 = vadd.f32 %v390, %v391
      %v393 = vmul.f32 %v392, %v342
      %v394 = vadd.f32 %v393, 1e-05
      %v395 = vrsqrt.pop %v394
      %v396 = vmul.f32 %v372, %v395
      %v397 = vmul.f32 %v373, %v395
      %v398 = vmul.f32 %v374, %v395
      %v399 = vmul.f32 %v375, %v395
      %400 = vset.pattern.permute.xlu0 2
      %401 = vperm.xlu0 %400, %v348
      %v402 = vpop.permute.xlu0 %401
      %404 = vset.pattern.permute.xlu0 2
      %405 = vperm.xlu0 %404, %v349
      %v406 = vpop.permute.xlu0 %405
      %408 = vset.pattern.permute.xlu0 2
      %409 = vperm.xlu0 %408, %v350
      %v410 = vpop.permute.xlu0 %409
      %412 = vset.pattern.permute.xlu0 2
      %413 = vperm.xlu0 %412, %v351
      %v414 = vpop.permute.xlu0 %413
      %v416 = vmul.f32 %v396, %v402
      %v417 = vmul.f32 %v397, %v406
      %v418 = vmul.f32 %v398, %v410
      %v419 = vmul.f32 %v399, %v414
      %420 = vset.pattern.permute.xlu0 3
      %421 = vperm.xlu0 %420, %v348
      %v422 = vpop.permute.xlu0 %421
      %424 = vset.pattern.permute.xlu0 3
      %425 = vperm.xlu0 %424, %v349
      %v426 = vpop.permute.xlu0 %425
      %428 = vset.pattern.permute.xlu0 3
      %429 = vperm.xlu0 %428, %v350
      %v430 = vpop.permute.xlu0 %429
      %432 = vset.pattern.permute.xlu0 3
      %433 = vperm.xlu0 %432, %v351
      %v434 = vpop.permute.xlu0 %433
      %v436 = vadd.f32 %v416, %v422
      %v437 = vadd.f32 %v417, %v426
      %v438 = vadd.f32 %v418, %v430
      %v439 = vadd.f32 %v419, %v434
      %440 = vst.msk [vmem:[%s241] sm:$0xff] %vm273, %v436
      %441 = vst.msk [vmem:[%s241 + $0x8] sm:$0xff] %vm273, %v437
      %442 = vst.msk [vmem:[%s241 + $0x10] sm:$0xff] %vm273, %v438
      %443 = vst.msk [vmem:[%s241 + $0x18] sm:$0xff] %vm273, %v439
      %v444 = vld [vmem:[%s2] sm:$0xff]
      %v445 = vld [vmem:[%s2 + $0x8] sm:$0xff]
      %v446 = vld [vmem:[%s2 + $0x10] sm:$0xff]
      %v447 = vld [vmem:[%s2 + $0x18] sm:$0xff]
      %449 = vset.pattern.permute.xlu0 0
      %450 = vperm.xlu0 %449, %v444
      %v451 = vpop.permute.xlu0 %450
      %454 = vset.pattern.permute.xlu0 0
      %455 = vperm.xlu0 %454, %v445
      %v456 = vpop.permute.xlu0 %455
      %459 = vset.pattern.permute.xlu0 0
      %460 = vperm.xlu0 %459, %v446
      %v461 = vpop.permute.xlu0 %460
      %464 = vset.pattern.permute.xlu0 0
      %465 = vperm.xlu0 %464, %v447
      %v466 = vpop.permute.xlu0 %465
      %v468 = vadd.f32 %v451, %v344
      %v469 = vadd.f32 %v456, %v345
      %v470 = vadd.f32 %v461, %v346
      %v471 = vadd.f32 %v466, %v347
      %v472 = vmul.f32 %v468, %v468
      %v473 = vmul.f32 %v469, %v469
      %v474 = vmul.f32 %v470, %v470
      %v475 = vmul.f32 %v471, %v471
      %v476 = vsel %vm273, %v472, 0.0
      %v477 = vsel %vm273, %v473, 0.0
      %v478 = vadd.f32 %v476, %v477
      %v479 = vsel %vm273, %v474, 0.0
      %v480 = vadd.f32 %v478, %v479
      %v481 = vsel %vm273, %v475, 0.0
      %v482 = vadd.f32 %v480, %v481
      %v483 = vrot.slane %v482, 4
      %v484 = vadd.f32 %v482, %v483
      %v485 = vrot.slane %v484, 2
      %v486 = vadd.f32 %v484, %v485
      %v487 = vrot.slane %v486, 1
      %v488 = vadd.f32 %v486, %v487
      %v489 = vmul.f32 %v488, %v342
      %v490 = vadd.f32 %v489, 1e-05
      %v491 = vrsqrt.pop %v490
      %v492 = vmul.f32 %v468, %v491
      %v493 = vmul.f32 %v469, %v491
      %v494 = vmul.f32 %v470, %v491
      %v495 = vmul.f32 %v471, %v491
      %v496 = vmul.f32 %v492, %v402
      %v497 = vmul.f32 %v493, %v406
      %v498 = vmul.f32 %v494, %v410
      %v499 = vmul.f32 %v495, %v414
      %v500 = vadd.f32 %v496, %v422
      %v501 = vadd.f32 %v497, %v426
      %v502 = vadd.f32 %v498, %v430
      %v503 = vadd.f32 %v499, %v434
      %504 = vst.msk [vmem:[%s249] sm:$0xff] %vm273, %v500
      %505 = vst.msk [vmem:[%s249 + $0x8] sm:$0xff] %vm273, %v501
      %506 = vst.msk [vmem:[%s249 + $0x10] sm:$0xff] %vm273, %v502
      %507 = vst.msk [vmem:[%s249 + $0x18] sm:$0xff] %vm273, %v503
      %p508 = scmp.lt.s32.totalorder %s20, 1
      %s509 = scalar_select %p508, %s20, 1
      %p510 = scmp.lt.s32.totalorder %s21, 0
      %s511 = scalar_select %p510, %s21, 0
      %s512 = smul.addr %s509, 4
      %s513 = sadd.s32 %s511, %s512
      %s514 = smul.addr %s513, 8
      %s515 = scalar_lea.vmem %s3, %s514
      %p516 = scmp.lt.s32.totalorder %s20, 1
      %s517 = scalar_select %p516, %s20, 1
      %p518 = scmp.lt.s32.totalorder %s21, 0
      %s519 = scalar_select %p518, %s21, 0
      %s520 = smul.addr %s517, 4
      %s521 = sadd.s32 %s519, %s520
      %s522 = smul.addr %s521, 8
      %s523 = scalar_lea.vmem %s4, %s522
      // Predicated region
      $region33: #{tpu_custom_call.1} parent=31 // pred_check
        %p524 = pneg %p118
      $region34: #{tpu_custom_call.1} parent=31 // pred_check_branch
        %526 = sbr.rel (%p524) target = $region36
      $region35: #{tpu_custom_call.1} parent=31 // pred_region
        _
      $region36: #{tpu_custom_call.1} parent=31 // pred_fallthru
        _
      // Predicated region
      $region37: #{tpu_custom_call.1} parent=31 // pred_check
        %p527 = pneg %p146
      $region38: #{tpu_custom_call.1} parent=31 // pred_check_branch
        %529 = sbr.rel (%p527) target = $region40
      $region39: #{tpu_custom_call.1} parent=31 // pred_region
        _
      $region40: #{tpu_custom_call.1} parent=31 // pred_fallthru
        _
    $region32: #{tpu_custom_call.1} parent=5 // pred_fallthru
      _
    %p530 = scmp.le.s32.totalorder 2, %s11
    // Predicated region
    $region41: #{tpu_custom_call.1} parent=5 // pred_check
      %p531 = pneg %p530
    $region42: #{tpu_custom_call.1} parent=5 // pred_check_branch
      %533 = sbr.rel (%p531) target = $region44
    $region43: #{tpu_custom_call.1} parent=5 // pred_region
      %s534 = ssub.s32 %s11, 2
      // Predicated region
      $region45: #{tpu_custom_call.1} parent=43 // pred_check
        %p535 = pneg %p124
      $region46: #{tpu_custom_call.1} parent=43 // pred_check_branch
        %537 = sbr.rel (%p535) target = $region48
      $region47: #{tpu_custom_call.1} parent=43 // pred_region
        %p538 = scmp.lt.s32.totalorder %s22, 1
        %s539 = scalar_select %p538, %s22, 1
        %p540 = scmp.lt.s32.totalorder %s23, 0
        %s541 = scalar_select %p540, %s23, 0
        %s542 = smul.addr %s539, 4
        %s543 = sadd.s32 %s541, %s542
        %s544 = smul.addr %s543, 8
        %s545 = scalar_lea.vmem %s3, %s544
      $region48: #{tpu_custom_call.1} parent=43 // pred_fallthru
        _
      // Predicated region
      $region49: #{tpu_custom_call.1} parent=43 // pred_check
        %p546 = pneg %p152
      $region50: #{tpu_custom_call.1} parent=43 // pred_check_branch
        %548 = sbr.rel (%p546) target = $region52
      $region51: #{tpu_custom_call.1} parent=43 // pred_region
        %p549 = scmp.lt.s32.totalorder %s22, 1
        %s550 = scalar_select %p549, %s22, 1
        %p551 = scmp.lt.s32.totalorder %s23, 0
        %s552 = scalar_select %p551, %s23, 0
        %s553 = smul.addr %s550, 4
        %s554 = sadd.s32 %s552, %s553
        %s555 = smul.addr %s554, 8
        %s556 = scalar_lea.vmem %s4, %s555
      $region52: #{tpu_custom_call.1} parent=43 // pred_fallthru
        _
    $region44: #{tpu_custom_call.1} parent=5 // pred_fallthru
      _
  $region6: #{tpu_custom_call.1} parent=0 // loop_footer
    %s15 = sadd.s32 1, %s11
  $region7: #{tpu_custom_call.1} parent=0 // loop_footer_branch
    %10 = sbr.rel target = $region3
  $region8: #{tpu_custom_call.1} parent=0 // loop_exit
    _

</llo_original>
